<compile_context>
chip_gen: v7x
topology: tpu7x:2x2x1
jax: 0.10.0
libtpu: 0.0.40
codegen_flags: <defaults>
</compile_context>

<pallas_src>
import functools

import jax
import jax.numpy as jnp
from jax import lax
from jax.experimental import pallas as pl
from jax.experimental.pallas import tpu as pltpu


def _laplace_kernel(x_ref, o_ref, *, h, w):
    # x_ref / o_ref: (ct, h*w) blocks; whole image plane lives on the lane axis.
    p = h * w
    x = x_ref[...].astype(jnp.float32)            # compute in f32, cast on store
    idx = lax.broadcasted_iota(jnp.int32, x.shape, 1)   # flat pixel index (static)
    col = idx % w                                        # column within image row

    # --- W stencil: left/right neighbors on the flat axis --------------------
    # pltpu.roll follows jnp.roll semantics: roll(x, s)[i] == x[i - s].
    left = pltpu.roll(x, shift=1, axis=1)          # left[i]  = x[i-1]
    right = pltpu.roll(x, shift=p - 1, axis=1)     # right[i] = x[i+1]
    row = (x
           + jnp.where(col > 0, left, 0.0)         # col==0 has no left neighbor
           + jnp.where(col < w - 1, right, 0.0))   # col==w-1 has no right one

    # --- H stencil: neighbors at flat offset +-w ------------------------------
    up = pltpu.roll(row, shift=w, axis=1)          # up[i]   = row[i-w]
    down = pltpu.roll(row, shift=p - w, axis=1)    # down[i] = row[i+w]
    box = (row
           + jnp.where(idx >= w, up, 0.0)          # top image row has no "up"
           + jnp.where(idx < p - w, down, 0.0))    # bottom row has no "down"

    # [[-1,-1,-1],[-1,8,-1],[-1,-1,-1]] * x  ==  9 * center - 3x3 box sum
    o_ref[...] = (9.0 * x - box).astype(o_ref.dtype)


def _pick_channel_tile(nc, p, itemsize, budget_bytes=8 * 1024 * 1024):
    """Rows (flattened N*C) per block.

    Budget covers the double-buffered in+out blocks (f32 temporaries add a few
    extra copies of one block); total stays well inside the 16 MiB v5e scoped
    default and the 32 MiB limit requested below for v6e/v7x.
    """
    per_row = 4 * p * itemsize                     # (in + out) x 2 buffers
    ct = max(1, budget_bytes // per_row)
    if ct >= nc:
        return nc                                  # tiny problem: one grid step
    ct = max(8, (ct // 8) * 8)                     # sublane-aligned full blocks
    # Prefer an even number of grid steps so v7x's two TensorCores stay balanced.
    steps = -(-nc // ct)
    if steps % 2 == 1:
        ct_even = ((-(-nc // (steps + 1)) + 7) // 8) * 8
        if 0 < ct_even <= ct and (-(-nc // ct_even)) % 2 == 0:
            ct = ct_even
    return ct


def channelwise_laplace(x):
    """x: (N, C, H, W) -> (N, C, H, W); depthwise 3x3 Laplacian, zero padding=1."""
    N, C, H, W = x.shape
    nc, p = N * C, H * W
    xf = x.reshape(nc, p)                          # lane-dense: plane on last dim
    ct = _pick_channel_tile(nc, p, x.dtype.itemsize)
    grid = (pl.cdiv(nc, ct),)
    # TODO(synk): for planes too large for one block even at ct=1, add an
    # H-tiled grid axis with a 1-row halo via the index_map (not via masking).
    out = pl.pallas_call(
        functools.partial(_laplace_kernel, h=H, w=W),
        out_shape=jax.ShapeDtypeStruct((nc, p), x.dtype),
        grid_spec=pltpu.PrefetchScalarGridSpec(
            num_scalar_prefetch=0,
            grid=grid,
            in_specs=[pl.BlockSpec((ct, p), lambda i: (i, 0))],
            out_specs=pl.BlockSpec((ct, p), lambda i: (i, 0)),
        ),
        compiler_params=pltpu.CompilerParams(
            dimension_semantics=("parallel",),
            vmem_limit_bytes=32 * 1024 * 1024,
        ),
    )(xf)
    return out.reshape(N, C, H, W)


def _reference_laplace(x):
    """Pure-JAX reference: identical to F.conv2d(x, laplacian, groups=C, padding=1)."""
    N, C, H, W = x.shape
    k = jnp.array([[-1., -1., -1.], [-1., 8., -1.], [-1., -1., -1.]], jnp.float32)
    w = jnp.broadcast_to(k[None, None, :, :], (C, 1, 3, 3)).astype(x.dtype)
    return lax.conv_general_dilated(
        x, w, window_strides=(1, 1), padding=((1, 1), (1, 1)),
        dimension_numbers=("NCHW", "OIHW", "NCHW"),
        feature_group_count=C)


if __name__ == "__main__":
    key = jax.random.PRNGKey(0)
    N, C, H, W = 2, 4, 16, 16
    x = jax.random.normal(key, (N, C, H, W), dtype=jnp.float32)

    out = jax.block_until_ready(channelwise_laplace(x))
    ref = jax.block_until_ready(_reference_laplace(x))

    assert out.shape == (N, C, H, W)
    assert jnp.allclose(out, ref, atol=1e-4, rtol=1e-4), \
        float(jnp.max(jnp.abs(out - ref)))
    print("KERNEL_OK")
</pallas_src>

<mosaic_0001>
module attributes {stable_mosaic.version = 11 : i64} {
  func.func @_laplace_kernel(%arg0: i32, %arg1: memref<8x256xf32, #tpu.memory_space<vmem>>, %arg2: memref<8x256xf32, #tpu.memory_space<vmem>>) attributes {dimension_semantics = [#tpu.dimension_semantics<parallel>], iteration_bounds = array<i64: 1>, scalar_prefetch = 0 : i64, scratch_operands = 0 : i64, tpu.core_type = #tpu.core_type<tc>, window_params = [{transform_indices = @transform_0, window_bounds = array<i64: 8, 256>}, {transform_indices = @transform_1, window_bounds = array<i64: 8, 256>}]} {
    %c0 = arith.constant 0 : index
    %c0_0 = arith.constant 0 : index
    %0 = vector.load %arg1[%c0, %c0_0] : memref<8x256xf32, #tpu.memory_space<vmem>>, vector<8x256xf32>
    %1 = tpu.iota {dimensions = array<i32: 1>} : vector<8x256xi32>
    %c16_i32 = arith.constant 16 : i32
    %c0_i32 = arith.constant 0 : i32
    %2 = arith.cmpi eq, %c16_i32, %c0_i32 : i32
    %c1_i32 = arith.constant 1 : i32
    %3 = arith.select %2, %c1_i32, %c16_i32 : i32
    %4 = vector.broadcast %3 : i32 to vector<8x256xi32>
    %5 = arith.remsi %1, %4 : vector<8x256xi32>
    %c0_i32_1 = arith.constant 0 : i32
    %6 = vector.broadcast %c0_i32_1 : i32 to vector<8x256xi32>
    %7 = arith.cmpi ne, %5, %6 : vector<8x256xi32>
    %c0_i32_2 = arith.constant 0 : i32
    %8 = vector.broadcast %c0_i32_2 : i32 to vector<8x256xi32>
    %9 = arith.cmpi slt, %5, %8 : vector<8x256xi32>
    %c0_i32_3 = arith.constant 0 : i32
    %10 = arith.cmpi slt, %3, %c0_i32_3 : i32
    %11 = vector.broadcast %10 : i1 to vector<8x256xi1>
    %12 = vector.broadcast %11 : vector<8x256xi1> to vector<8x256xi1>
    %13 = arith.xori %9, %12 : vector<8x256xi1>
    %14 = arith.andi %13, %7 : vector<8x256xi1>
    %15 = vector.broadcast %3 : i32 to vector<8x256xi32>
    %16 = arith.addi %5, %15 : vector<8x256xi32>
    %17 = arith.select %14, %16, %5 : vector<8x256xi1>, vector<8x256xi32>
    %c1_i32_4 = arith.constant 1 : i32
    %18 = tpu.dynamic_rotate %0 by %c1_i32_4 dim 1 : vector<8x256xf32>, i32 -> vector<8x256xf32>
    %c255_i32 = arith.constant 255 : i32
    %19 = tpu.dynamic_rotate %0 by %c255_i32 dim 1 : vector<8x256xf32>, i32 -> vector<8x256xf32>
    %c0_i32_5 = arith.constant 0 : i32
    %20 = vector.broadcast %c0_i32_5 : i32 to vector<8x256xi32>
    %21 = arith.cmpi sgt, %17, %20 : vector<8x256xi32>
    %cst = arith.constant 0.000000e+00 : f32
    %22 = vector.broadcast %cst : f32 to vector<8x256xf32>
    %23 = arith.select %21, %18, %22 : vector<8x256xi1>, vector<8x256xf32>
    %24 = arith.addf %0, %23 : vector<8x256xf32>
    %c15_i32 = arith.constant 15 : i32
    %25 = vector.broadcast %c15_i32 : i32 to vector<8x256xi32>
    %26 = arith.cmpi slt, %17, %25 : vector<8x256xi32>
    %cst_6 = arith.constant 0.000000e+00 : f32
    %27 = vector.broadcast %cst_6 : f32 to vector<8x256xf32>
    %28 = arith.select %26, %19, %27 : vector<8x256xi1>, vector<8x256xf32>
    %29 = arith.addf %24, %28 : vector<8x256xf32>
    %c16_i32_7 = arith.constant 16 : i32
    %30 = tpu.dynamic_rotate %29 by %c16_i32_7 dim 1 : vector<8x256xf32>, i32 -> vector<8x256xf32>
    %c240_i32 = arith.constant 240 : i32
    %31 = tpu.dynamic_rotate %29 by %c240_i32 dim 1 : vector<8x256xf32>, i32 -> vector<8x256xf32>
    %c16_i32_8 = arith.constant 16 : i32
    %32 = vector.broadcast %c16_i32_8 : i32 to vector<8x256xi32>
    %33 = arith.cmpi sge, %1, %32 : vector<8x256xi32>
    %cst_9 = arith.constant 0.000000e+00 : f32
    %34 = vector.broadcast %cst_9 : f32 to vector<8x256xf32>
    %35 = arith.select %33, %30, %34 : vector<8x256xi1>, vector<8x256xf32>
    %36 = arith.addf %29, %35 : vector<8x256xf32>
    %c240_i32_10 = arith.constant 240 : i32
    %37 = vector.broadcast %c240_i32_10 : i32 to vector<8x256xi32>
    %38 = arith.cmpi slt, %1, %37 : vector<8x256xi32>
    %cst_11 = arith.constant 0.000000e+00 : f32
    %39 = vector.broadcast %cst_11 : f32 to vector<8x256xf32>
    %40 = arith.select %38, %31, %39 : vector<8x256xi1>, vector<8x256xf32>
    %41 = arith.addf %36, %40 : vector<8x256xf32>
    %cst_12 = arith.constant 9.000000e+00 : f32
    %42 = vector.broadcast %cst_12 : f32 to vector<8x256xf32>
    %43 = arith.mulf %42, %0 : vector<8x256xf32>
    %44 = arith.subf %43, %41 : vector<8x256xf32>
    %c0_13 = arith.constant 0 : index
    %c0_14 = arith.constant 0 : index
    %45 = vector.load %arg2[%c0_13, %c0_14] : memref<8x256xf32, #tpu.memory_space<vmem>>, vector<8x256xf32>
    tpu.vector_store %arg2[%c0_13, %c0_14], %44 {strides = array<i32>} : memref<8x256xf32, #tpu.memory_space<vmem>>, vector<8x256xf32>,
    return
  }
  func.func @transform_0(%arg0: i32) -> (i32, i32) {
    %c0_i32 = arith.constant 0 : i32
    %c0_i32_0 = arith.constant 0 : i32
    return %arg0, %c0_i32 : i32, i32
  }
  func.func @transform_1(%arg0: i32) -> (i32, i32) {
    %c0_i32 = arith.constant 0 : i32
    %c0_i32_0 = arith.constant 0 : i32
    return %arg0, %c0_i32 : i32, i32
  }
}

</mosaic_0001>

<llo_original>
// kernel: tpu_custom_call.1
$region0: #{tpu_custom_call.1}
  #allocation0 [shape = 'u32[]', space=smem, size = 0x4, offset = 0x4, fixed_abs, tag = 'smem constant byte address 0x4 - core index']
  #allocation1 [shape = 'u32[144,128]{1,0:T(1,128)}', space=vmem, size = 0x12000, scoped, tag = 'internal scratch']
  %s0 = inlined_call_operand.hbm [shape: f32[8,256], index: 0, kind: input, shape index: {}]
  %s1 = inlined_call_operand.hbm [shape: f32[8,256], index: 1, kind: output, shape index: {}]
  %s2 = sld [smem:[#allocation0]]
  $region18: #{tpu_custom_call.1} parent=0
    _
  %s4 = ssub.s32 1, %s2
  %s5 = scalar_select 0, %s4, %s2
  $region1: #{tpu_custom_call.1} parent=0
    #allocation2 [shape = 'u8[8192]{0}', space=vmem, size = 0x2000, scoped, tag = 'input window, operand 0, single buffered']
    #allocation3 [shape = 's32[1]{0}', space=sflag, size = 0x4, scoped, tag = 'scoped memory for tpu_custom_call.1']
    #allocation4 [shape = 's32[1]{0}', space=sflag, size = 0x4, scoped, tag = 'scoped memory for tpu_custom_call.1']
    #allocation5 [shape = 'u8[8192]{0}', space=vmem, size = 0x2000, scoped, tag = 'output window, operand 0, single buffered']
    %6 = vsyncpa [#allocation3], 0
    %7 = vsyncpa [#allocation4], 0
    // Predicated region
    $region2: #{tpu_custom_call.1} parent=1 // pred_check
      _
    $region3: #{tpu_custom_call.1} parent=1 // pred_check_branch
      %9 = sbr.rel (0) target = $region5
    $region4: #{tpu_custom_call.1} parent=1 // pred_region
      %s11 = ssub.s32 256, 256
      %12 = vsyncadd [#allocation3], %s11
      %s14 = sshll.u32 [#allocation2], 4
      %s15 = int_to_ptr.vmem [resolvable:$true] %s14
      %17 = dma.hbm_to_vmem [thread:$0]  %s0, 256, %s15, [#allocation3]
    $region5: #{tpu_custom_call.1} parent=1 // pred_fallthru
      _
    // Predicated region
    $region6: #{tpu_custom_call.1} parent=1 // pred_check
      _
    $region7: #{tpu_custom_call.1} parent=1 // pred_check_branch
      %19 = sbr.rel (0) target = $region9
    $region8: #{tpu_custom_call.1} parent=1 // pred_region
      %20 = dma.done [#allocation3], 256
    $region9: #{tpu_custom_call.1} parent=1 // pred_fallthru
      _
    %v21 = vld [vmem:[#allocation2] sm:$0xff]
    %v22 = vld [vmem:[#allocation2 + $0x8] sm:$0xff]
    %v23 = vlaneseq
    %v24 = vand.u32 %v23, 127
    %v25 = vadd.s32 %v24, 128
    %vm26 = vcmp.lt.s32.totalorder %v24, 0
    %v27 = vsub.s32 0, %v24
    %v28 = vsel %vm26, %v27, %v24
    %v29 = vshrl.u32 %v28, 4
    %v30 = vand.u32 %v28, 15
    %v31 = vsub.s32 0, %v30
    %v32 = vsel %vm26, %v31, %v30
    %vm33 = vcmp.lt.s32.totalorder %v25, 0
    %v34 = vsub.s32 0, %v25
    %v35 = vsel %vm33, %v34, %v25
    %v36 = vshrl.u32 %v35, 4
    %v37 = vand.u32 %v35, 15
    %v38 = vsub.s32 0, %v37
    %v39 = vsel %vm33, %v38, %v37
    %vm40 = vcmp.ne.s32.totalorder %v32, 0
    %vm41 = vcmp.ne.s32.totalorder %v39, 0
    %vm42 = vcmp.lt.s32.totalorder %v32, 0
    %vm43 = vcmp.lt.s32.totalorder %v39, 0
    %vm44 = vmand %vm42, %vm40
    %vm45 = vmand %vm43, %vm41
    %v46 = vadd.s32 %v32, 16
    %v47 = vadd.s32 %v39, 16
    %v48 = vsel %vm44, %v46, %v32
    %v49 = vsel %vm45, %v47, %v39
    %50 = vrot.lane.b32.xlu0 %v21, 1
    %v51 = vpop.permute.xlu0 %50
    %52 = vrot.lane.b32.xlu0 %v22, 1
    %v53 = vpop.permute.xlu0 %52
    %vm54 = vcmp.lt.s32.totalorder %v24, 1
    %v55 = vsel %vm54, %v51, %v53
    %v56 = vsel %vm54, %v53, %v51
    %57 = vrot.lane.b32.xlu0 %v21, 127
    %v58 = vpop.permute.xlu0 %57
    %59 = vrot.lane.b32.xlu0 %v22, 127
    %v60 = vpop.permute.xlu0 %59
    %vm61 = vcmp.lt.s32.totalorder %v24, 127
    %v62 = vsel %vm61, %v58, %v60
    %v63 = vsel %vm61, %v60, %v58
    %vm64 = vcmp.gt.s32.totalorder %v48, 0
    %vm65 = vcmp.gt.s32.totalorder %v49, 0
    %v66 = vsel %vm64, %v56, 0.0
    %v67 = vsel %vm65, %v55, 0.0
    %v68 = vadd.f32 %v21, %v66
    %v69 = vadd.f32 %v22, %v67
    %vm70 = vcmp.lt.s32.totalorder %v48, 15
    %vm71 = vcmp.lt.s32.totalorder %v49, 15
    %v72 = vsel %vm70, %v62, 0.0
    %v73 = vsel %vm71, %v63, 0.0
    %v74 = vadd.f32 %v68, %v72
    %v75 = vadd.f32 %v69, %v73
    %76 = vrot.lane.b32.xlu0 %v74, 16
    %v77 = vpop.permute.xlu0 %76
    %78 = vrot.lane.b32.xlu0 %v75, 16
    %v79 = vpop.permute.xlu0 %78
    %vm80 = vcmp.lt.s32.totalorder %v24, 16
    %v81 = vsel %vm80, %v77, %v79
    %v82 = vsel %vm80, %v79, %v77
    %83 = vrot.lane.b32.xlu0 %v74, 112
    %v84 = vpop.permute.xlu0 %83
    %85 = vrot.lane.b32.xlu0 %v75, 112
    %v86 = vpop.permute.xlu0 %85
    %vm87 = vcmp.lt.s32.totalorder %v24, 112
    %v88 = vsel %vm87, %v84, %v86
    %v89 = vsel %vm87, %v86, %v84
    %vm90 = vcmp.ge.s32.totalorder %v24, 16
    %vm91 = vcmp.ge.s32.totalorder %v25, 16
    %v92 = vsel %vm90, %v82, 0.0
    %v93 = vsel %vm91, %v81, 0.0
    %v94 = vadd.f32 %v74, %v92
    %v95 = vadd.f32 %v75, %v93
    %vm96 = vcmp.lt.s32.totalorder %v24, 240
    %vm97 = vcmp.lt.s32.totalorder %v25, 240
    %v98 = vsel %vm96, %v88, 0.0
    %v99 = vsel %vm97, %v89, 0.0
    %v100 = vadd.f32 %v94, %v98
    %v101 = vadd.f32 %v95, %v99
    %v102 = vmul.f32 %v21, 9.0
    %v103 = vmul.f32 %v22, 9.0
    %v104 = vsub.f32 %v102, %v100
    %v105 = vsub.f32 %v103, %v101
    %106 = vst [vmem:[#allocation5] sm:$0xff] %v104
    %107 = vst [vmem:[#allocation5 + $0x8] sm:$0xff] %v105
    // Predicated region
    $region10: #{tpu_custom_call.1} parent=1 // pred_check
      _
    $region11: #{tpu_custom_call.1} parent=1 // pred_check_branch
      %109 = sbr.rel (0) target = $region13
    $region12: #{tpu_custom_call.1} parent=1 // pred_region
      %s111 = ssub.s32 256, 256
      %112 = vsyncadd [#allocation4], %s111
      %s114 = sshll.u32 [#allocation5], 4
      %s115 = int_to_ptr.vmem [resolvable:$true] %s114
      %117 = dma.vmem_to_hbm [thread:$0]  %s115, 256, %s1, [#allocation4]
    $region13: #{tpu_custom_call.1} parent=1 // pred_fallthru
      _
    // Predicated region
    $region14: #{tpu_custom_call.1} parent=1 // pred_check
      _
    $region15: #{tpu_custom_call.1} parent=1 // pred_check_branch
      %119 = sbr.rel (0) target = $region17
    $region16: #{tpu_custom_call.1} parent=1 // pred_region
      %120 = dma.done [#allocation4], 256
    $region17: #{tpu_custom_call.1} parent=1 // pred_fallthru
      _
    %121 = vsyncpa [#allocation3], 1
    %122 = vsyncpa [#allocation4], 1

</llo_original>
